<compile_context>
chip_gen: v7x
topology: tpu7x:2x2x1
jax: 0.10.0
libtpu: 0.0.40
codegen_flags: <defaults>
</compile_context>

<pallas_src>
import functools

import numpy as np

import jax
import jax.numpy as jnp
from jax.experimental import pallas as pl
from jax.experimental.pallas import tpu as pltpu


# ----------------------------- Pallas kernel ------------------------------- #

def _fused_taylor_kernel(x01_ref, wpack_ref, wcat_ref, bcat_ref, p1_ref,
                         mask9_ref, out3_ref, p2_ref, *, cin, cout, wo):
    """Whole TaylorBlock forward on VMEM-resident (C, M) tiles, M = B*Ho*Wo."""
    m = out3_ref.shape[1]
    k1 = 9 * cin

    bcat = bcat_ref[...]                      # (4*cout, 1): [0.5*b1; b2; b_c1; b_c2]
    wcat = wcat_ref[...]                      # (2*cout, max(9*cin, 9*cout))

    # --- imap1 (0.5 folded) / imap2: both 1x1 stride-2 convs in ONE matmul -- #
    # x01 = [x0_strided ; x1_strided] stacked along K, wpack is block-diagonal:
    # rows [0:cout) give 0.5*w_k_1, rows [cout:2*cout) give w_k.
    y01 = jnp.dot(wpack_ref[...], x01_ref[...],
                  preferred_element_type=jnp.float32) + bcat[:2 * cout, :]
    half_wk1 = y01[:cout, :]
    w_k = y01[cout:, :]

    # --- euler_h3 conv1: 3x3 stride-2 (im2col host-side) + BN + ReLU -------- #
    im = jnp.dot(wcat[:cout, :k1], p1_ref[...],
                 preferred_element_type=jnp.float32) + bcat[2 * cout:3 * cout, :]
    im = jnp.maximum(im, 0.0)

    # --- in-VMEM im2col of `im` for conv2 (3x3, s=1, pad=1) ----------------- #
    # lane index = b*(ho*wo) + h*wo + w, so the (dh, dw) tap is a static lane
    # rotation by (dh-1)*wo + (dw-1).  The host-precomputed mask row zeroes the
    # zero-padding taps AND every lane the rotation wrapped around.
    mask9 = mask9_ref[...]                    # (9, m)
    t = 0
    for dh in range(3):
        for dw in range(3):
            delta = (dh - 1) * wo + (dw - 1)
            if delta == 0:
                tap = im                      # center tap: mask is all-ones
            else:
                rolled = pltpu.roll(im, shift=(-delta) % m, axis=1)
                tap = rolled * mask9[t:t + 1, :]
            p2_ref[t * cout:(t + 1) * cout, :] = tap
            t += 1

    # --- conv2 + BN + Taylor combine + ReLU (one K = 9*cout MXU pass) ------- #
    grad = jnp.dot(wcat[cout:, :9 * cout], p2_ref[...],
                   preferred_element_type=jnp.float32) + bcat[3 * cout:, :]
    out = jnp.maximum(grad + half_wk1 - w_k, 0.0)

    # packed, sublane-aligned, full-lane stores
    out3_ref[:cout, :] = w_k.astype(out3_ref.dtype)
    out3_ref[cout:2 * cout, :] = im.astype(out3_ref.dtype)
    out3_ref[2 * cout:, :] = out.astype(out3_ref.dtype)


# ------------------------------- JAX glue ---------------------------------- #

def _conv_w_t(w):
    """PyTorch OIHW conv weight -> transposed matmul weight (Cout, kh*kw*Cin),
    column order (dh, dw, ci)."""
    co, ci, kh, kw = w.shape
    return jnp.transpose(w, (0, 2, 3, 1)).reshape(co, kh * kw * ci)


def _im2col_t(x, ksize, stride, pad):
    """NHWC x -> (ksize*ksize*C, B*Ho*Wo); row order (dh, dw, c), col (b, h, w)."""
    B, H, W, C = x.shape
    xp = jnp.pad(x, ((0, 0), (pad, pad), (pad, pad), (0, 0)))
    Ho = (H + 2 * pad - ksize) // stride + 1
    Wo = (W + 2 * pad - ksize) // stride + 1
    cols = []
    for dh in range(ksize):
        for dw in range(ksize):
            cols.append(xp[:, dh:dh + stride * Ho:stride,
                           dw:dw + stride * Wo:stride, :])
    p = jnp.stack(cols, axis=0)                  # (k*k, B, Ho, Wo, C)
    p = jnp.transpose(p, (0, 4, 1, 2, 3))        # (k*k, C, B, Ho, Wo)
    return p.reshape(ksize * ksize * C, B * Ho * Wo), (Ho, Wo)


def _tap_masks(b, ho, wo):
    """(9, B*ho*wo) f32 validity masks for the 3x3/s1/p1 in-kernel im2col of `im`.
    Static in (B, Ho, Wo); also zeroes lanes that a lane-rotation would wrap."""
    m = b * ho * wo
    lane = np.arange(m)
    hh = (lane % (ho * wo)) // wo
    ww = lane % wo
    rows = []
    for dh in range(3):
        for dw in range(3):
            src_h = hh + (dh - 1)
            src_w = ww + (dw - 1)
            valid = (src_h >= 0) & (src_h < ho) & (src_w >= 0) & (src_w < wo)
            rows.append(valid.astype(np.float32))
    return jnp.asarray(np.stack(rows, axis=0))


def taylor_block_forward(x0, x1, x2, P, stride=2):
    """x0, x1, x2: NHWC (B, H, W, Cin).  Returns (w_k, im, out) in NCHW."""
    B, H, W, Cin = x0.shape
    Cout = P["w_imap1"].shape[0]

    # 1x1 stride-2 conv == strided slice + matmul; stack both inputs along K so a
    # single block-diagonal matmul computes 0.5*w_k_1 and w_k together.
    # TODO(synk): at production Cin drop the zero off-diagonal blocks (two matmuls)
    #             and move these slices/transposes + the conv1 im2col into the kernel.
    x0s = x0[:, ::stride, ::stride, :]
    x1s = x1[:, ::stride, ::stride, :]
    _, Ho, Wo, _ = x0s.shape
    M = B * Ho * Wo
    x0t = x0s.reshape(M, Cin).T                    # (Cin, M)
    x1t = x1s.reshape(M, Cin).T
    x01t = jnp.concatenate([x0t, x1t], axis=0)     # (2*Cin, M)

    # Fold BN (eval) scale into weight rows; fold the Taylor 0.5 into imap1.
    w1t = _conv_w_t(P["w_imap1"]) * (0.5 * P["s_imap1"])[:, None]
    w2t = _conv_w_t(P["w_imap2"]) * P["s_imap2"][:, None]
    wpack = jnp.zeros((2 * Cout, 2 * Cin), jnp.float32)
    wpack = wpack.at[:Cout, :Cin].set(w1t).at[Cout:, Cin:].set(w2t)

    wc1 = _conv_w_t(P["w_conv1"]) * P["s_conv1"][:, None]    # (Cout, 9*Cin)
    wc2 = _conv_w_t(P["w_conv2"]) * P["s_conv2"][:, None]    # (Cout, 9*Cout)
    kw = max(9 * Cin, 9 * Cout)
    wcat = jnp.zeros((2 * Cout, kw), jnp.float32)
    wcat = wcat.at[:Cout, :9 * Cin].set(wc1).at[Cout:, :9 * Cout].set(wc2)

    bcat = jnp.concatenate([0.5 * P["b_imap1"], P["b_imap2"],
                            P["b_conv1"], P["b_conv2"]]).reshape(4 * Cout, 1)

    p1t, _ = _im2col_t(x2, 3, stride, 1)                     # (9*Cin, M)
    mask9 = _tap_masks(B, Ho, Wo)                            # (9, M)

    kernel = functools.partial(_fused_taylor_kernel, cin=Cin, cout=Cout, wo=Wo)

    def full(shape):
        return pl.BlockSpec(shape, lambda i, s=shape: (0,) * len(s))

    out3 = pl.pallas_call(
        kernel,
        out_shape=jax.ShapeDtypeStruct((3 * Cout, M), jnp.float32),
        grid=(1,),
        in_specs=[full(x01t.shape), full(wpack.shape), full(wcat.shape),
                  full(bcat.shape), full(p1t.shape), full(mask9.shape)],
        out_specs=full((3 * Cout, M)),
        scratch_shapes=[pltpu.VMEM((9 * Cout, M), jnp.float32)],
        compiler_params=pltpu.CompilerParams(
            dimension_semantics=("arbitrary",)),
    )(x01t, wpack, wcat, bcat, p1t, mask9)

    wk_t = out3[:Cout]
    im_t = out3[Cout:2 * Cout]
    out_t = out3[2 * Cout:]

    # (Cout, B*Ho*Wo) -> NCHW: reshape + tiny leading-axis permute only.
    def to_nchw(a):
        return a.reshape(Cout, B, Ho, Wo).transpose(1, 0, 2, 3)

    return to_nchw(wk_t), to_nchw(im_t), to_nchw(out_t)


# --------------------------- params / reference ---------------------------- #

def init_params(key, cin, cout):
    ks = jax.random.split(key, 8)

    def conv_w(k, co, ci, kh, kw):
        return (0.1 * jax.random.normal(k, (co, ci, kh, kw))).astype(jnp.float32)

    def bn_fold(k, c):
        k1, k2, k3, k4 = jax.random.split(k, 4)
        gamma = 1.0 + 0.1 * jax.random.normal(k1, (c,))
        beta = 0.1 * jax.random.normal(k2, (c,))
        mean = 0.1 * jax.random.normal(k3, (c,))
        var = jnp.abs(jax.random.normal(k4, (c,))) + 0.5
        scale = gamma / jnp.sqrt(var + 1e-5)
        bias = beta - mean * scale
        return scale.astype(jnp.float32), bias.astype(jnp.float32)

    P = {}
    P["w_imap1"] = conv_w(ks[0], cout, cin, 1, 1)
    P["s_imap1"], P["b_imap1"] = bn_fold(ks[1], cout)
    P["w_imap2"] = conv_w(ks[2], cout, cin, 1, 1)
    P["s_imap2"], P["b_imap2"] = bn_fold(ks[3], cout)
    P["w_conv1"] = conv_w(ks[4], cout, cin, 3, 3)
    P["s_conv1"], P["b_conv1"] = bn_fold(ks[5], cout)
    P["w_conv2"] = conv_w(ks[6], cout, cout, 3, 3)
    P["s_conv2"], P["b_conv2"] = bn_fold(ks[7], cout)
    return P


def _ref_conv(x, w, stride, pad):
    return jax.lax.conv_general_dilated(
        x, jnp.transpose(w, (2, 3, 1, 0)),
        window_strides=(stride, stride),
        padding=((pad, pad), (pad, pad)),
        dimension_numbers=("NHWC", "HWIO", "NHWC"))


def ref_forward(x0, x1, x2, P, stride=2):
    bn = lambda y, s, b: y * s + b
    wk1 = bn(_ref_conv(x0, P["w_imap1"], stride, 0), P["s_imap1"], P["b_imap1"])
    wk = bn(_ref_conv(x1, P["w_imap2"], stride, 0), P["s_imap2"], P["b_imap2"])
    im = jnp.maximum(bn(_ref_conv(x2, P["w_conv1"], stride, 1),
                        P["s_conv1"], P["b_conv1"]), 0.0)
    grad = bn(_ref_conv(im, P["w_conv2"], 1, 1), P["s_conv2"], P["b_conv2"])
    out = jnp.maximum(-wk + 0.5 * wk1 + grad, 0.0)
    nchw = lambda a: a.transpose(0, 3, 1, 2)
    return nchw(wk), nchw(im), nchw(out)


# ----------------------------------- main ----------------------------------- #

if __name__ == "__main__":
    B, Cin, H, W = 2, 4, 16, 16     # PyTorch NCHW input shape (2, 4, 16, 16)
    planes = 8                       # block.expansion = 1 -> Cout = 8
    key = jax.random.PRNGKey(0)
    kx0, kx1, kx2, kp = jax.random.split(key, 4)

    # inputs generated directly in NHWC (equivalent NCHW tensor is a transpose)
    x0 = jax.random.normal(kx0, (B, H, W, Cin), jnp.float32)
    x1 = jax.random.normal(kx1, (B, H, W, Cin), jnp.float32)
    x2 = jax.random.normal(kx2, (B, H, W, Cin), jnp.float32)

    params = init_params(kp, Cin, planes)

    w_k, im, out = jax.block_until_ready(taylor_block_forward(x0, x1, x2, params))
    w_k_r, im_r, out_r = ref_forward(x0, x1, x2, params)

    assert w_k.shape == (B, planes, H // 2, W // 2)
    assert im.shape == (B, planes, H // 2, W // 2)
    assert out.shape == (B, planes, H // 2, W // 2)
    for a, b in ((w_k, w_k_r), (im, im_r), (out, out_r)):
        assert jnp.allclose(a, b, rtol=1e-4, atol=1e-4), float(jnp.max(jnp.abs(a - b)))

    print("KERNEL_OK")
</pallas_src>

<mosaic_0001>
module attributes {stable_mosaic.version = 11 : i64} {
  func.func @_fused_taylor_kernel(%arg0: i32, %arg1: memref<8x128xf32, #tpu.memory_space<vmem>>, %arg2: memref<16x8xf32, #tpu.memory_space<vmem>>, %arg3: memref<16x72xf32, #tpu.memory_space<vmem>>, %arg4: memref<32x1xf32, #tpu.memory_space<vmem>>, %arg5: memref<36x128xf32, #tpu.memory_space<vmem>>, %arg6: memref<9x128xf32, #tpu.memory_space<vmem>>, %arg7: memref<24x128xf32, #tpu.memory_space<vmem>>, %arg8: memref<72x128xf32, #tpu.memory_space<vmem>>) attributes {dimension_semantics = [#tpu.dimension_semantics<arbitrary>], iteration_bounds = array<i64: 1>, scalar_prefetch = 0 : i64, scratch_operands = 1 : i64, tpu.core_type = #tpu.core_type<tc>, window_params = [{pipeline_mode = #tpu.pipeline_mode<synchronous>, transform_indices = @transform_0, window_bounds = array<i64: 8, 128>}, {pipeline_mode = #tpu.pipeline_mode<synchronous>, transform_indices = @transform_1, window_bounds = array<i64: 16, 8>}, {pipeline_mode = #tpu.pipeline_mode<synchronous>, transform_indices = @transform_2, window_bounds = array<i64: 16, 72>}, {pipeline_mode = #tpu.pipeline_mode<synchronous>, transform_indices = @transform_3, window_bounds = array<i64: 32, 1>}, {pipeline_mode = #tpu.pipeline_mode<synchronous>, transform_indices = @transform_4, window_bounds = array<i64: 36, 128>}, {pipeline_mode = #tpu.pipeline_mode<synchronous>, transform_indices = @transform_5, window_bounds = array<i64: 9, 128>}, {pipeline_mode = #tpu.pipeline_mode<synchronous>, transform_indices = @transform_6, window_bounds = array<i64: 24, 128>}]} {
    %c0 = arith.constant 0 : index
    %c0_0 = arith.constant 0 : index
    %0 = vector.load %arg4[%c0, %c0_0] : memref<32x1xf32, #tpu.memory_space<vmem>>, vector<32x1xf32>
    %c0_1 = arith.constant 0 : index
    %c0_2 = arith.constant 0 : index
    %1 = vector.load %arg3[%c0_1, %c0_2] : memref<16x72xf32, #tpu.memory_space<vmem>>, vector<16x72xf32>
    %c0_3 = arith.constant 0 : index
    %c0_4 = arith.constant 0 : index
    %2 = vector.load %arg2[%c0_3, %c0_4] : memref<16x8xf32, #tpu.memory_space<vmem>>, vector<16x8xf32>
    %c0_5 = arith.constant 0 : index
    %c0_6 = arith.constant 0 : index
    %3 = vector.load %arg1[%c0_5, %c0_6] : memref<8x128xf32, #tpu.memory_space<vmem>>, vector<8x128xf32>
    %cst = arith.constant dense<0.000000e+00> : vector<16x128xf32>
    %4 = tpu.matmul %2, %3, %cst {dimension_numbers = #tpu.dot_dimension_numbers<[1], [0], [0], [1], [0, 0, 1, 1], [], []>} : vector<16x8xf32>, vector<8x128xf32>, vector<16x128xf32> -> vector<16x128xf32>
    %5 = vector.extract_strided_slice %0 {offsets = [0, 0], sizes = [16, 1], strides = [1, 1]} : vector<32x1xf32> to vector<16x1xf32>
    %6 = vector.broadcast %5 : vector<16x1xf32> to vector<16x128xf32>
    %7 = arith.addf %4, %6 : vector<16x128xf32>
    %8 = vector.extract_strided_slice %7 {offsets = [0, 0], sizes = [8, 128], strides = [1, 1]} : vector<16x128xf32> to vector<8x128xf32>
    %9 = vector.extract_strided_slice %7 {offsets = [8, 0], sizes = [8, 128], strides = [1, 1]} : vector<16x128xf32> to vector<8x128xf32>
    %10 = vector.extract_strided_slice %1 {offsets = [0, 0], sizes = [8, 36], strides = [1, 1]} : vector<16x72xf32> to vector<8x36xf32>
    %c0_7 = arith.constant 0 : index
    %c0_8 = arith.constant 0 : index
    %11 = vector.load %arg5[%c0_7, %c0_8] : memref<36x128xf32, #tpu.memory_space<vmem>>, vector<36x128xf32>
    %cst_9 = arith.constant dense<0.000000e+00> : vector<8x128xf32>
    %12 = tpu.matmul %10, %11, %cst_9 {dimension_numbers = #tpu.dot_dimension_numbers<[1], [0], [0], [1], [0, 0, 1, 1], [], []>} : vector<8x36xf32>, vector<36x128xf32>, vector<8x128xf32> -> vector<8x128xf32>
    %13 = vector.extract_strided_slice %0 {offsets = [16, 0], sizes = [8, 1], strides = [1, 1]} : vector<32x1xf32> to vector<8x1xf32>
    %14 = vector.broadcast %13 : vector<8x1xf32> to vector<8x128xf32>
    %15 = arith.addf %12, %14 : vector<8x128xf32>
    %cst_10 = arith.constant 0.000000e+00 : f32
    %16 = vector.broadcast %cst_10 : f32 to vector<8x128xf32>
    %17 = arith.maximumf %15, %16 : vector<8x128xf32>
    %c0_11 = arith.constant 0 : index
    %c0_12 = arith.constant 0 : index
    %18 = vector.load %arg6[%c0_11, %c0_12] : memref<9x128xf32, #tpu.memory_space<vmem>>, vector<9x128xf32>
    %c9_i32 = arith.constant 9 : i32
    %19 = tpu.dynamic_rotate %17 by %c9_i32 dim 1 : vector<8x128xf32>, i32 -> vector<8x128xf32>
    %20 = vector.extract_strided_slice %18 {offsets = [0, 0], sizes = [1, 128], strides = [1, 1]} : vector<9x128xf32> to vector<1x128xf32>
    %21 = vector.broadcast %20 : vector<1x128xf32> to vector<8x128xf32>
    %22 = arith.mulf %19, %21 : vector<8x128xf32>
    %c0_13 = arith.constant 0 : index
    %c0_14 = arith.constant 0 : index
    %23 = vector.load %arg8[%c0_13, %c0_14] : memref<72x128xf32, #tpu.memory_space<vmem>>, vector<8x128xf32>
    tpu.vector_store %arg8[%c0_13, %c0_14], %22 {strides = array<i32>} : memref<72x128xf32, #tpu.memory_space<vmem>>, vector<8x128xf32>,
    %c8_i32 = arith.constant 8 : i32
    %24 = tpu.dynamic_rotate %17 by %c8_i32 dim 1 : vector<8x128xf32>, i32 -> vector<8x128xf32>
    %25 = vector.extract_strided_slice %18 {offsets = [1, 0], sizes = [1, 128], strides = [1, 1]} : vector<9x128xf32> to vector<1x128xf32>
    %26 = vector.broadcast %25 : vector<1x128xf32> to vector<8x128xf32>
    %27 = arith.mulf %24, %26 : vector<8x128xf32>
    %c8 = arith.constant 8 : index
    %c0_15 = arith.constant 0 : index
    %28 = vector.load %arg8[%c8, %c0_15] : memref<72x128xf32, #tpu.memory_space<vmem>>, vector<8x128xf32>
    tpu.vector_store %arg8[%c8, %c0_15], %27 {strides = array<i32>} : memref<72x128xf32, #tpu.memory_space<vmem>>, vector<8x128xf32>,
    %c7_i32 = arith.constant 7 : i32
    %29 = tpu.dynamic_rotate %17 by %c7_i32 dim 1 : vector<8x128xf32>, i32 -> vector<8x128xf32>
    %30 = vector.extract_strided_slice %18 {offsets = [2, 0], sizes = [1, 128], strides = [1, 1]} : vector<9x128xf32> to vector<1x128xf32>
    %31 = vector.broadcast %30 : vector<1x128xf32> to vector<8x128xf32>
    %32 = arith.mulf %29, %31 : vector<8x128xf32>
    %c16 = arith.constant 16 : index
    %c0_16 = arith.constant 0 : index
    %33 = vector.load %arg8[%c16, %c0_16] : memref<72x128xf32, #tpu.memory_space<vmem>>, vector<8x128xf32>
    tpu.vector_store %arg8[%c16, %c0_16], %32 {strides = array<i32>} : memref<72x128xf32, #tpu.memory_space<vmem>>, vector<8x128xf32>,
    %c1_i32 = arith.constant 1 : i32
    %34 = tpu.dynamic_rotate %17 by %c1_i32 dim 1 : vector<8x128xf32>, i32 -> vector<8x128xf32>
    %35 = vector.extract_strided_slice %18 {offsets = [3, 0], sizes = [1, 128], strides = [1, 1]} : vector<9x128xf32> to vector<1x128xf32>
    %36 = vector.broadcast %35 : vector<1x128xf32> to vector<8x128xf32>
    %37 = arith.mulf %34, %36 : vector<8x128xf32>
    %c24 = arith.constant 24 : index
    %c0_17 = arith.constant 0 : index
    %38 = vector.load %arg8[%c24, %c0_17] : memref<72x128xf32, #tpu.memory_space<vmem>>, vector<8x128xf32>
    tpu.vector_store %arg8[%c24, %c0_17], %37 {strides = array<i32>} : memref<72x128xf32, #tpu.memory_space<vmem>>, vector<8x128xf32>,
    %c32 = arith.constant 32 : index
    %c0_18 = arith.constant 0 : index
    %39 = vector.load %arg8[%c32, %c0_18] : memref<72x128xf32, #tpu.memory_space<vmem>>, vector<8x128xf32>
    tpu.vector_store %arg8[%c32, %c0_18], %17 {strides = array<i32>} : memref<72x128xf32, #tpu.memory_space<vmem>>, vector<8x128xf32>,
    %c127_i32 = arith.constant 127 : i32
    %40 = tpu.dynamic_rotate %17 by %c127_i32 dim 1 : vector<8x128xf32>, i32 -> vector<8x128xf32>
    %41 = vector.extract_strided_slice %18 {offsets = [5, 0], sizes = [1, 128], strides = [1, 1]} : vector<9x128xf32> to vector<1x128xf32>
    %42 = vector.broadcast %41 : vector<1x128xf32> to vector<8x128xf32>
    %43 = arith.mulf %40, %42 : vector<8x128xf32>
    %c40 = arith.constant 40 : index
    %c0_19 = arith.constant 0 : index
    %44 = vector.load %arg8[%c40, %c0_19] : memref<72x128xf32, #tpu.memory_space<vmem>>, vector<8x128xf32>
    tpu.vector_store %arg8[%c40, %c0_19], %43 {strides = array<i32>} : memref<72x128xf32, #tpu.memory_space<vmem>>, vector<8x128xf32>,
    %c121_i32 = arith.constant 121 : i32
    %45 = tpu.dynamic_rotate %17 by %c121_i32 dim 1 : vector<8x128xf32>, i32 -> vector<8x128xf32>
    %46 = vector.extract_strided_slice %18 {offsets = [6, 0], sizes = [1, 128], strides = [1, 1]} : vector<9x128xf32> to vector<1x128xf32>
    %47 = vector.broadcast %46 : vector<1x128xf32> to vector<8x128xf32>
    %48 = arith.mulf %45, %47 : vector<8x128xf32>
    %c48 = arith.constant 48 : index
    %c0_20 = arith.constant 0 : index
    %49 = vector.load %arg8[%c48, %c0_20] : memref<72x128xf32, #tpu.memory_space<vmem>>, vector<8x128xf32>
    tpu.vector_store %arg8[%c48, %c0_20], %48 {strides = array<i32>} : memref<72x128xf32, #tpu.memory_space<vmem>>, vector<8x128xf32>,
    %c120_i32 = arith.constant 120 : i32
    %50 = tpu.dynamic_rotate %17 by %c120_i32 dim 1 : vector<8x128xf32>, i32 -> vector<8x128xf32>
    %51 = vector.extract_strided_slice %18 {offsets = [7, 0], sizes = [1, 128], strides = [1, 1]} : vector<9x128xf32> to vector<1x128xf32>
    %52 = vector.broadcast %51 : vector<1x128xf32> to vector<8x128xf32>
    %53 = arith.mulf %50, %52 : vector<8x128xf32>
    %c56 = arith.constant 56 : index
    %c0_21 = arith.constant 0 : index
    %54 = vector.load %arg8[%c56, %c0_21] : memref<72x128xf32, #tpu.memory_space<vmem>>, vector<8x128xf32>
    tpu.vector_store %arg8[%c56, %c0_21], %53 {strides = array<i32>} : memref<72x128xf32, #tpu.memory_space<vmem>>, vector<8x128xf32>,
    %c119_i32 = arith.constant 119 : i32
    %55 = tpu.dynamic_rotate %17 by %c119_i32 dim 1 : vector<8x128xf32>, i32 -> vector<8x128xf32>
    %56 = vector.extract_strided_slice %18 {offsets = [8, 0], sizes = [1, 128], strides = [1, 1]} : vector<9x128xf32> to vector<1x128xf32>
    %57 = vector.broadcast %56 : vector<1x128xf32> to vector<8x128xf32>
    %58 = arith.mulf %55, %57 : vector<8x128xf32>
    %c64 = arith.constant 64 : index
    %c0_22 = arith.constant 0 : index
    %59 = vector.load %arg8[%c64, %c0_22] : memref<72x128xf32, #tpu.memory_space<vmem>>, vector<8x128xf32>
    tpu.vector_store %arg8[%c64, %c0_22], %58 {strides = array<i32>} : memref<72x128xf32, #tpu.memory_space<vmem>>, vector<8x128xf32>,
    %60 = vector.extract_strided_slice %1 {offsets = [8, 0], sizes = [8, 72], strides = [1, 1]} : vector<16x72xf32> to vector<8x72xf32>
    %c0_23 = arith.constant 0 : index
    %c0_24 = arith.constant 0 : index
    %61 = vector.load %arg8[%c0_23, %c0_24] : memref<72x128xf32, #tpu.memory_space<vmem>>, vector<72x128xf32>
    %cst_25 = arith.constant dense<0.000000e+00> : vector<8x128xf32>
    %62 = tpu.matmul %60, %61, %cst_25 {dimension_numbers = #tpu.dot_dimension_numbers<[1], [0], [0], [1], [0, 0, 1, 1], [], []>} : vector<8x72xf32>, vector<72x128xf32>, vector<8x128xf32> -> vector<8x128xf32>
    %63 = vector.extract_strided_slice %0 {offsets = [24, 0], sizes = [8, 1], strides = [1, 1]} : vector<32x1xf32> to vector<8x1xf32>
    %64 = vector.broadcast %63 : vector<8x1xf32> to vector<8x128xf32>
    %65 = arith.addf %62, %64 : vector<8x128xf32>
    %66 = arith.addf %65, %8 : vector<8x128xf32>
    %67 = arith.subf %66, %9 : vector<8x128xf32>
    %cst_26 = arith.constant 0.000000e+00 : f32
    %68 = vector.broadcast %cst_26 : f32 to vector<8x128xf32>
    %69 = arith.maximumf %67, %68 : vector<8x128xf32>
    %c0_27 = arith.constant 0 : index
    %c0_28 = arith.constant 0 : index
    %70 = vector.load %arg7[%c0_27, %c0_28] : memref<24x128xf32, #tpu.memory_space<vmem>>, vector<8x128xf32>
    tpu.vector_store %arg7[%c0_27, %c0_28], %9 {strides = array<i32>} : memref<24x128xf32, #tpu.memory_space<vmem>>, vector<8x128xf32>,
    %c8_29 = arith.constant 8 : index
    %c0_30 = arith.constant 0 : index
    %71 = vector.load %arg7[%c8_29, %c0_30] : memref<24x128xf32, #tpu.memory_space<vmem>>, vector<8x128xf32>
    tpu.vector_store %arg7[%c8_29, %c0_30], %17 {strides = array<i32>} : memref<24x128xf32, #tpu.memory_space<vmem>>, vector<8x128xf32>,
    %c16_31 = arith.constant 16 : index
    %c0_32 = arith.constant 0 : index
    %72 = vector.load %arg7[%c16_31, %c0_32] : memref<24x128xf32, #tpu.memory_space<vmem>>, vector<8x128xf32>
    tpu.vector_store %arg7[%c16_31, %c0_32], %69 {strides = array<i32>} : memref<24x128xf32, #tpu.memory_space<vmem>>, vector<8x128xf32>,
    return
  }
  func.func @transform_0(%arg0: i32) -> (i32, i32) {
    %c0_i32 = arith.constant 0 : i32
    %c0_i32_0 = arith.constant 0 : i32
    %c0_i32_1 = arith.constant 0 : i32
    return %c0_i32, %c0_i32_0 : i32, i32
  }
  func.func @transform_1(%arg0: i32) -> (i32, i32) {
    %c0_i32 = arith.constant 0 : i32
    %c0_i32_0 = arith.constant 0 : i32
    %c0_i32_1 = arith.constant 0 : i32
    return %c0_i32, %c0_i32_0 : i32, i32
  }
  func.func @transform_2(%arg0: i32) -> (i32, i32) {
    %c0_i32 = arith.constant 0 : i32
    %c0_i32_0 = arith.constant 0 : i32
    %c0_i32_1 = arith.constant 0 : i32
    return %c0_i32, %c0_i32_0 : i32, i32
  }
  func.func @transform_3(%arg0: i32) -> (i32, i32) {
    %c0_i32 = arith.constant 0 : i32
    %c0_i32_0 = arith.constant 0 : i32
    %c0_i32_1 = arith.constant 0 : i32
    return %c0_i32, %c0_i32_0 : i32, i32
  }
  func.func @transform_4(%arg0: i32) -> (i32, i32) {
    %c0_i32 = arith.constant 0 : i32
    %c0_i32_0 = arith.constant 0 : i32
    %c0_i32_1 = arith.constant 0 : i32
    return %c0_i32, %c0_i32_0 : i32, i32
  }
  func.func @transform_5(%arg0: i32) -> (i32, i32) {
    %c0_i32 = arith.constant 0 : i32
    %c0_i32_0 = arith.constant 0 : i32
    %c0_i32_1 = arith.constant 0 : i32
    return %c0_i32, %c0_i32_0 : i32, i32
  }
  func.func @transform_6(%arg0: i32) -> (i32, i32) {
    %c0_i32 = arith.constant 0 : i32
    %c0_i32_0 = arith.constant 0 : i32
    %c0_i32_1 = arith.constant 0 : i32
    return %c0_i32, %c0_i32_0 : i32, i32
  }
}

</mosaic_0001>

<llo_original>
// kernel: tpu_custom_call.1
$region0: #{tpu_custom_call.1}
  #allocation0 [shape = 'u32[]', space=smem, size = 0x4, offset = 0x4, fixed_abs, tag = 'smem constant byte address 0x4 - core index']
  #allocation1 [shape = 'u32[144,128]{1,0:T(1,128)}', space=vmem, size = 0x12000, scoped, tag = 'internal scratch']
  #allocation2 [shape = 'f32[72,128]{1,0:T(8,128)}', space=vmem, size = 0x9000, scoped, tag = 'scratch operand']
  %s0 = inlined_call_operand.hbm [shape: f32[8,128], index: 0, kind: input, shape index: {}]
  %s1 = inlined_call_operand.vmem [shape: f32[16,8], index: 1, kind: input, shape index: {}]
  %s2 = inlined_call_operand.vmem [shape: f32[16,72], index: 2, kind: input, shape index: {}]
  %s3 = inlined_call_operand.vmem [shape: f32[32,1], index: 3, kind: input, shape index: {}]
  %s4 = inlined_call_operand.vmem [shape: f32[36,128], index: 4, kind: input, shape index: {}]
  %s5 = inlined_call_operand.vmem [shape: f32[9,128], index: 5, kind: input, shape index: {}]
  %s6 = inlined_call_operand.hbm [shape: f32[24,128], index: 6, kind: output, shape index: {}]
  %s7 = sld [smem:[#allocation0]]
  $region38: #{tpu_custom_call.1} parent=0
    _
  %s9 = ssub.s32 1, %s7
  %s10 = scalar_select 0, %s9, %s7
  $region1: #{tpu_custom_call.1} parent=0
    #allocation3 [shape = 'u8[4096]{0}', space=vmem, size = 0x1000, scoped, tag = 'input window, operand 0, single buffered']
    #allocation4 [shape = 's32[1]{0}', space=sflag, size = 0x4, scoped, tag = 'scoped memory for tpu_custom_call.1']
    #allocation5 [shape = 's32[1]{0}', space=sflag, size = 0x4, scoped, tag = 'scoped memory for tpu_custom_call.1']
    #allocation6 [shape = 'u8[12288]{0}', space=vmem, size = 0x3000, scoped, tag = 'output window, operand 0, single buffered']
    %11 = vsyncpa [#allocation4], 0
    %12 = vsyncpa [#allocation5], 0
    // Predicated region
    $region2: #{tpu_custom_call.1} parent=1 // pred_check
      _
    $region3: #{tpu_custom_call.1} parent=1 // pred_check_branch
      %14 = sbr.rel (0) target = $region5
    $region4: #{tpu_custom_call.1} parent=1 // pred_region
      %s16 = ssub.s32 128, 128
      %17 = vsyncadd [#allocation4], %s16
      %s19 = sshll.u32 [#allocation3], 4
      %s20 = int_to_ptr.vmem [resolvable:$true] %s19
      %22 = dma.hbm_to_vmem [thread:$0]  %s0, 128, %s20, [#allocation4]
    $region5: #{tpu_custom_call.1} parent=1 // pred_fallthru
      _
    // Predicated region
    $region6: #{tpu_custom_call.1} parent=1 // pred_check
      _
    $region7: #{tpu_custom_call.1} parent=1 // pred_check_branch
      %24 = sbr.rel (0) target = $region9
    $region8: #{tpu_custom_call.1} parent=1 // pred_region
      _
    $region9: #{tpu_custom_call.1} parent=1 // pred_fallthru
      _
    // Predicated region
    $region10: #{tpu_custom_call.1} parent=1 // pred_check
      _
    $region11: #{tpu_custom_call.1} parent=1 // pred_check_branch
      %26 = sbr.rel (0) target = $region13
    $region12: #{tpu_custom_call.1} parent=1 // pred_region
      _
    $region13: #{tpu_custom_call.1} parent=1 // pred_fallthru
      _
    // Predicated region
    $region14: #{tpu_custom_call.1} parent=1 // pred_check
      _
    $region15: #{tpu_custom_call.1} parent=1 // pred_check_branch
      %28 = sbr.rel (0) target = $region17
    $region16: #{tpu_custom_call.1} parent=1 // pred_region
      _
    $region17: #{tpu_custom_call.1} parent=1 // pred_fallthru
      _
    // Predicated region
    $region18: #{tpu_custom_call.1} parent=1 // pred_check
      _
    $region19: #{tpu_custom_call.1} parent=1 // pred_check_branch
      %30 = sbr.rel (0) target = $region21
    $region20: #{tpu_custom_call.1} parent=1 // pred_region
      _
    $region21: #{tpu_custom_call.1} parent=1 // pred_fallthru
      _
    // Predicated region
    $region22: #{tpu_custom_call.1} parent=1 // pred_check
      _
    $region23: #{tpu_custom_call.1} parent=1 // pred_check_branch
      %32 = sbr.rel (0) target = $region25
    $region24: #{tpu_custom_call.1} parent=1 // pred_region
      _
    $region25: #{tpu_custom_call.1} parent=1 // pred_fallthru
      _
    // Predicated region
    $region26: #{tpu_custom_call.1} parent=1 // pred_check
      _
    $region27: #{tpu_custom_call.1} parent=1 // pred_check_branch
      %34 = sbr.rel (0) target = $region29
    $region28: #{tpu_custom_call.1} parent=1 // pred_region
      %35 = dma.done [#allocation4], 128
    $region29: #{tpu_custom_call.1} parent=1 // pred_fallthru
      _
    %v36 = vld [vmem:[%s3] sm:$0xff]
    %v37 = vld [vmem:[%s3 + $0x8] sm:$0xff]
    %v38 = vld [vmem:[%s3 + $0x10] sm:$0xff]
    %v39 = vld [vmem:[%s3 + $0x18] sm:$0xff]
    %v40 = vld [vmem:[%s2] sm:$0xff]
    %v41 = vld [vmem:[%s2 + $0x8] sm:$0xff]
    %v42 = vld [vmem:[%s1] sm:$0xff]
    %v43 = vld [vmem:[%s1 + $0x8] sm:$0xff]
    %v44 = vld [vmem:[#allocation3] sm:$0xff]
    %46 = vset.pattern.permute.xlu0 0
    %47 = vperm.xlu0 %46, %v36
    %v48 = vpop.permute.xlu0 %47
    %51 = vset.pattern.permute.xlu0 0
    %52 = vperm.xlu0 %51, %v37
    %v53 = vpop.permute.xlu0 %52
    %vm55 = vcmask 64512
    %v57 = vsel %vm55, %v42, 0
    %v60 = vsel %vm55, %v43, 0
    %62 = vmatprep.subr.mxu0 0.0
    %63 = vmatpush1.msra.mxu0 %v44
    %64 = vmatprep.subr.mxu0 0.0
    %65 = vmatpush1.msra.mxu0 0.0
    %66 = vmatprep.subr.mxu0 0.0
    %67 = vmatpush1.msra.mxu0 0.0
    %68 = vmatprep.subr.mxu0 0.0
    %69 = vmatpush1.msra.mxu0 0.0
    %70 = vmatprep.subr.mxu0 0.0
    %71 = vmatpush1.msra.mxu0 0.0
    %72 = vmatprep.subr.mxu0 0.0
    %73 = vmatpush1.msra.mxu0 0.0
    %74 = vmatprep.subr.mxu0 0.0
    %75 = vmatpush1.msra.mxu0 0.0
    %76 = vmatprep.subr.mxu0 0.0
    %77 = vmatpush1.msra.mxu0 0.0
    %78 = vmatprep.subr.mxu0 0.0
    %79 = vmatpush1.msra.mxu0 0.0
    %80 = vmatprep.subr.mxu0 0.0
    %81 = vmatpush1.msra.mxu0 0.0
    %82 = vmatprep.subr.mxu0 0.0
    %83 = vmatpush1.msra.mxu0 0.0
    %84 = vmatprep.subr.mxu0 0.0
    %85 = vmatpush1.msra.mxu0 0.0
    %86 = vmatprep.subr.mxu0 0.0
    %87 = vmatpush1.msra.mxu0 0.0
    %88 = vmatprep.subr.mxu0 0.0
    %89 = vmatpush1.msra.mxu0 0.0
    %90 = vmatprep.subr.mxu0 0.0
    %91 = vmatpush1.msra.mxu0 0.0
    %92 = vmatprep.subr.mxu0 0.0
    %93 = vmatpush1.msra.mxu0 0.0
    %94 = vmatprep.subr.mxu0 0.0
    %95 = vmatpush1.msra.mxu0 0.0
    %96 = vmatprep.subr.mxu0 0.0
    %97 = vmatpush1.msra.mxu0 0.0
    %98 = vmatprep.subr.mxu0 0.0
    %99 = vmatpush1.msra.mxu0 0.0
    %100 = vmatprep.subr.mxu0 0.0
    %101 = vmatpush1.msra.mxu0 0.0
    %102 = vmatprep.subr.mxu0 0.0
    %103 = vmatpush1.msra.mxu0 0.0
    %104 = vmatprep.subr.mxu0 0.0
    %105 = vmatpush1.msra.mxu0 0.0
    %106 = vmatprep.subr.mxu0 0.0
    %107 = vmatpush1.msra.mxu0 0.0
    %108 = vmatprep.subr.mxu0 0.0
    %109 = vmatpush1.msra.mxu0 0.0
    %110 = vmatprep.subr.mxu0 0.0
    %111 = vmatpush1.msra.mxu0 0.0
    %112 = vmatprep.subr.mxu0 0.0
    %113 = vmatpush1.msra.mxu0 0.0
    %114 = vmatprep.subr.mxu0 0.0
    %115 = vmatpush1.msra.mxu0 0.0
    %116 = vmatprep.subr.mxu0 0.0
    %117 = vmatpush1.msra.mxu0 0.0
    %118 = vmatprep.subr.mxu0 0.0
    %119 = vmatpush1.msra.mxu0 0.0
    %120 = vmatprep.subr.mxu0 0.0
    %121 = vmatpush1.msra.mxu0 0.0
    %122 = vmatprep.subr.mxu0 0.0
    %123 = vmatpush1.msra.mxu0 0.0
    %124 = vmatprep.subr.mxu0 0.0
    %125 = vmatpush1.msra.mxu0 0.0
    %126 = vmatprep.mubr.f32.mxu0 0.0
    %127 = vmatmul.mubr.f32.gmra.mrb[0].mxu0 %v57
    %v128 = vpop.f32.mrb[0].mxu0
    %v129 = vadd.f32 %v48, %v128
    %v130 = vpop.f32.mrb[0].mxu0
    %131 = vmatprep.mubr.f32.mxu0 0.0
    %132 = vmatmul.mubr.f32.gmra.mrb[0].mxu0 %v60
    %v133 = vpop.f32.mrb[0].mxu0
    %v134 = vadd.f32 %v53, %v133
    %v135 = vpop.f32.mrb[0].mxu0
    %136 = vdwg.mxu0
    %v137 = vld [vmem:[%s4] sm:$0xff]
    %v138 = vld [vmem:[%s4 + $0x8] sm:$0xff]
    %v139 = vld [vmem:[%s4 + $0x10] sm:$0xff]
    %v140 = vld [vmem:[%s4 + $0x18] sm:$0xff]
    %v141 = vld [vmem:[%s4 + $0x20] sm:$0xf]
    %143 = vset.pattern.permute.xlu0 0
    %144 = vperm.xlu0 %143, %v38
    %v145 = vpop.permute.xlu0 %144
    %vm147 = vcmask 293888
    %v149 = vsel %vm147, %v40, 0
    %vm151 = vcmask 1043456
    %v153 = vsel %vm151, %v141, 0
    %155 = vmatprep.subr.mxu0 0.0
    %156 = vmatpush1.msra.mxu0 %v137
    %157 = vmatprep.subr.mxu0 0.0
    %158 = vmatpush1.msra.mxu0 %v138
    %159 = vmatprep.subr.mxu0 0.0
    %160 = vmatpush1.msra.mxu0 %v139
    %161 = vmatprep.subr.mxu0 0.0
    %162 = vmatpush1.msra.mxu0 %v140
    %163 = vmatprep.subr.mxu0 0.0
    %164 = vmatpush1.msra.mxu0 %v153
    %165 = vmatprep.subr.mxu0 0.0
    %166 = vmatpush1.msra.mxu0 0.0
    %167 = vmatprep.subr.mxu0 0.0
    %168 = vmatpush1.msra.mxu0 0.0
    %169 = vmatprep.subr.mxu0 0.0
    %170 = vmatpush1.msra.mxu0 0.0
    %171 = vmatprep.subr.mxu0 0.0
    %172 = vmatpush1.msra.mxu0 0.0
    %173 = vmatprep.subr.mxu0 0.0
    %174 = vmatpush1.msra.mxu0 0.0
    %175 = vmatprep.subr.mxu0 0.0
    %176 = vmatpush1.msra.mxu0 0.0
    %177 = vmatprep.subr.mxu0 0.0
    %178 = vmatpush1.msra.mxu0 0.0
    %179 = vmatprep.subr.mxu0 0.0
    %180 = vmatpush1.msra.mxu0 0.0
    %181 = vmatprep.subr.mxu0 0.0
    %182 = vmatpush1.msra.mxu0 0.0
    %183 = vmatprep.subr.mxu0 0.0
    %184 = vmatpush1.msra.mxu0 0.0
    %185 = vmatprep.subr.mxu0 0.0
    %186 = vmatpush1.msra.mxu0 0.0
    %187 = vmatprep.subr.mxu0 0.0
    %188 = vmatpush1.msra.mxu0 0.0
    %189 = vmatprep.subr.mxu0 0.0
    %190 = vmatpush1.msra.mxu0 0.0
    %191 = vmatprep.subr.mxu0 0.0
    %192 = vmatpush1.msra.mxu0 0.0
    %193 = vmatprep.subr.mxu0 0.0
    %194 = vmatpush1.msra.mxu0 0.0
    %195 = vmatprep.subr.mxu0 0.0
    %196 = vmatpush1.msra.mxu0 0.0
    %197 = vmatprep.subr.mxu0 0.0
    %198 = vmatpush1.msra.mxu0 0.0
    %199 = vmatprep.subr.mxu0 0.0
    %200 = vmatpush1.msra.mxu0 0.0
    %201 = vmatprep.subr.mxu0 0.0
    %202 = vmatpush1.msra.mxu0 0.0
    %203 = vmatprep.subr.mxu0 0.0
    %204 = vmatpush1.msra.mxu0 0.0
    %205 = vmatprep.subr.mxu0 0.0
    %206 = vmatpush1.msra.mxu0 0.0
    %207 = vmatprep.subr.mxu0 0.0
    %208 = vmatpush1.msra.mxu0 0.0
    %209 = vmatprep.subr.mxu0 0.0
    %210 = vmatpush1.msra.mxu0 0.0
    %211 = vmatprep.subr.mxu0 0.0
    %212 = vmatpush1.msra.mxu0 0.0
    %213 = vmatprep.subr.mxu0 0.0
    %214 = vmatpush1.msra.mxu0 0.0
    %215 = vmatprep.subr.mxu0 0.0
    %216 = vmatpush1.msra.mxu0 0.0
    %217 = vmatprep.subr.mxu0 0.0
    %218 = vmatpush1.msra.mxu0 0.0
    %219 = vmatprep.mubr.f32.mxu0 0.0
    %220 = vmatmul.mubr.f32.gmra.mrb[0].mxu0 %v149
    %v221 = vpop.f32.mrb[0].mxu0
    %v222 = vadd.f32 %v145, %v221
    %v223 = vpop.f32.mrb[0].mxu0
    %224 = vdwg.mxu0
    %v225 = vmax.f32 %v222, 0.0
    %v226 = vld [vmem:[%s5] sm:$0xff]
    %v227 = vld [vmem:[%s5 + $0x8] sm:$0x1]
    %228 = vrot.lane.b32.xlu0 %v225, 9
    %v229 = vpop.permute.xlu0 %228
    %v230 = vlaneseq
    %v231 = vshrl.u32 %v230, 7
    %v232 = vsub.s32 0, %v231
    %v233 = vrot.slane %v226, %v232
    %v234 = vmul.f32 %v229, %v233
    %235 = vst [vmem:[#allocation2] sm:$0xff] %v234
    %236 = vrot.lane.b32.xlu0 %v225, 8
    %v237 = vpop.permute.xlu0 %236
    %v238 = vlaneseq
    %v239 = vshrl.u32 %v238, 7
    %v240 = vsub.s32 1, %v239
    %v241 = vrot.slane %v226, %v240
    %v242 = vmul.f32 %v237, %v241
    %243 = vst [vmem:[#allocation2 + $0x8] sm:$0xff] %v242
    %244 = vrot.lane.b32.xlu0 %v225, 7
    %v245 = vpop.permute.xlu0 %244
    %v246 = vlaneseq
    %v247 = vshrl.u32 %v246, 7
    %v248 = vsub.s32 2, %v247
    %v249 = vrot.slane %v226, %v248
    %v250 = vmul.f32 %v245, %v249
    %251 = vst [vmem:[#allocation2 + $0x10] sm:$0xff] %v250
    %252 = vrot.lane.b32.xlu0 %v225, 1
    %v253 = vpop.permute.xlu0 %252
    %v254 = vlaneseq
    %v255 = vshrl.u32 %v254, 7
    %v256 = vsub.s32 3, %v255
    %v257 = vrot.slane %v226, %v256
    %v258 = vmul.f32 %v253, %v257
    %259 = vst [vmem:[#allocation2 + $0x18] sm:$0xff] %v258
    %260 = vst [vmem:[#allocation2 + $0x20] sm:$0xff] %v225
    %261 = vrot.lane.b32.xlu0 %v225, 127
    %v262 = vpop.permute.xlu0 %261
    %v263 = vlaneseq
    %v264 = vshrl.u32 %v263, 7
    %v265 = vsub.s32 5, %v264
    %v266 = vrot.slane %v226, %v265
    %v267 = vmul.f32 %v262, %v266
    %268 = vst [vmem:[#allocation2 + $0x28] sm:$0xff] %v267
    %269 = vrot.lane.b32.xlu0 %v225, 121
    %v270 = vpop.permute.xlu0 %269
    %v271 = vlaneseq
    %v272 = vshrl.u32 %v271, 7
    %v273 = vsub.s32 6, %v272
    %v274 = vrot.slane %v226, %v273
    %v275 = vmul.f32 %v270, %v274
    %276 = vst [vmem:[#allocation2 + $0x30] sm:$0xff] %v275
    %277 = vrot.lane.b32.xlu0 %v225, 120
    %v278 = vpop.permute.xlu0 %277
    %v279 = vlaneseq
    %v280 = vshrl.u32 %v279, 7
    %v281 = vsub.s32 7, %v280
    %v282 = vrot.slane %v226, %v281
    %v283 = vmul.f32 %v278, %v282
    %284 = vst [vmem:[#allocation2 + $0x38] sm:$0xff] %v283
    %285 = vrot.lane.b32.xlu0 %v225, 119
    %v286 = vpop.permute.xlu0 %285
    %v287 = vlaneseq
    %v288 = vshrl.u32 %v287, 7
    %v289 = vsub.s32 0, %v288
    %v290 = vrot.slane %v227, %v289
    %v291 = vmul.f32 %v286, %v290
    %292 = vst [vmem:[#allocation2 + $0x40] sm:$0xff] %v291
    %v293 = vld [vmem:[#allocation2] sm:$0xff]
    %v294 = vld [vmem:[#allocation2 + $0x8] sm:$0xff]
    %v295 = vld [vmem:[#allocation2 + $0x10] sm:$0xff]
    %v296 = vld [vmem:[#allocation2 + $0x18] sm:$0xff]
    %v297 = vld [vmem:[#allocation2 + $0x20] sm:$0xff]
    %v298 = vld [vmem:[#allocation2 + $0x28] sm:$0xff]
    %v299 = vld [vmem:[#allocation2 + $0x30] sm:$0xff]
    %v300 = vld [vmem:[#allocation2 + $0x38] sm:$0xff]
    %v301 = vld [vmem:[#allocation2 + $0x40] sm:$0xff]
    %303 = vset.pattern.permute.xlu0 0
    %304 = vperm.xlu0 %303, %v39
    %v305 = vpop.permute.xlu0 %304
    %vm307 = vcmask 588800
    %v309 = vsel %vm307, %v41, 0
    %311 = vmatprep.subr.mxu0 0.0
    %312 = vmatpush1.msra.mxu0 %v293
    %313 = vmatprep.subr.mxu0 0.0
    %314 = vmatpush1.msra.mxu0 %v294
    %315 = vmatprep.subr.mxu0 0.0
    %316 = vmatpush1.msra.mxu0 %v295
    %317 = vmatprep.subr.mxu0 0.0
    %318 = vmatpush1.msra.mxu0 %v296
    %319 = vmatprep.subr.mxu0 0.0
    %320 = vmatpush1.msra.mxu0 %v297
    %321 = vmatprep.subr.mxu0 0.0
    %322 = vmatpush1.msra.mxu0 %v298
    %323 = vmatprep.subr.mxu0 0.0
    %324 = vmatpush1.msra.mxu0 %v299
    %325 = vmatprep.subr.mxu0 0.0
    %326 = vmatpush1.msra.mxu0 %v300
    %327 = vmatprep.subr.mxu0 0.0
    %328 = vmatpush1.msra.mxu0 %v301
    %329 = vmatprep.subr.mxu0 0.0
    %330 = vmatpush1.msra.mxu0 0.0
    %331 = vmatprep.subr.mxu0 0.0
    %332 = vmatpush1.msra.mxu0 0.0
    %333 = vmatprep.subr.mxu0 0.0
    %334 = vmatpush1.msra.mxu0 0.0
    %335 = vmatprep.subr.mxu0 0.0
    %336 = vmatpush1.msra.mxu0 0.0
    %337 = vmatprep.subr.mxu0 0.0
    %338 = vmatpush1.msra.mxu0 0.0
    %339 = vmatprep.subr.mxu0 0.0
    %340 = vmatpush1.msra.mxu0 0.0
    %341 = vmatprep.subr.mxu0 0.0
    %342 = vmatpush1.msra.mxu0 0.0
    %343 = vmatprep.subr.mxu0 0.0
    %344 = vmatpush1.msra.mxu0 0.0
    %345 = vmatprep.subr.mxu0 0.0
    %346 = vmatpush1.msra.mxu0 0.0
    %347 = vmatprep.subr.mxu0 0.0
    %348 = vmatpush1.msra.mxu0 0.0
    %349 = vmatprep.subr.mxu0 0.0
    %350 = vmatpush1.msra.mxu0 0.0
    %351 = vmatprep.subr.mxu0 0.0
    %352 = vmatpush1.msra.mxu0 0.0
    %353 = vmatprep.subr.mxu0 0.0
    %354 = vmatpush1.msra.mxu0 0.0
    %355 = vmatprep.subr.mxu0 0.0
    %356 = vmatpush1.msra.mxu0 0.0
    %357 = vmatprep.subr.mxu0 0.0
    %358 = vmatpush1.msra.mxu0 0.0
    %359 = vmatprep.subr.mxu0 0.0
    %360 = vmatpush1.msra.mxu0 0.0
    %361 = vmatprep.subr.mxu0 0.0
    %362 = vmatpush1.msra.mxu0 0.0
    %363 = vmatprep.subr.mxu0 0.0
    %364 = vmatpush1.msra.mxu0 0.0
    %365 = vmatprep.subr.mxu0 0.0
    %366 = vmatpush1.msra.mxu0 0.0
    %367 = vmatprep.subr.mxu0 0.0
    %368 = vmatpush1.msra.mxu0 0.0
    %369 = vmatprep.subr.mxu0 0.0
    %370 = vmatpush1.msra.mxu0 0.0
    %371 = vmatprep.subr.mxu0 0.0
    %372 = vmatpush1.msra.mxu0 0.0
    %373 = vmatprep.subr.mxu0 0.0
    %374 = vmatpush1.msra.mxu0 0.0
    %375 = vmatprep.mubr.f32.mxu0 0.0
    %376 = vmatmul.mubr.f32.gmra.mrb[0].mxu0 %v309
    %v377 = vpop.f32.mrb[0].mxu0
    %v378 = vadd.f32 %v305, %v377
    %v379 = vpop.f32.mrb[0].mxu0
    %380 = vdwg.mxu0
    %v381 = vadd.f32 %v378, %v129
    %v382 = vsub.f32 %v381, %v134
    %v383 = vmax.f32 %v382, 0.0
    %384 = vst [vmem:[#allocation6] sm:$0xff] %v134
    %385 = vst [vmem:[#allocation6 + $0x8] sm:$0xff] %v225
    %386 = vst [vmem:[#allocation6 + $0x10] sm:$0xff] %v383
    // Predicated region
    $region30: #{tpu_custom_call.1} parent=1 // pred_check
      _
    $region31: #{tpu_custom_call.1} parent=1 // pred_check_branch
      %388 = sbr.rel (0) target = $region33
    $region32: #{tpu_custom_call.1} parent=1 // pred_region
      %s390 = ssub.s32 384, 384
      %391 = vsyncadd [#allocation5], %s390
      %s392 = sshll.u32 [#allocation6], 4
      %s393 = int_to_ptr.vmem [resolvable:$true] %s392
      %398 = dma.vmem_to_hbm [thread:$0]  %s393, 384, %s6, [#allocation5], 128, 128, 8
    $region33: #{tpu_custom_call.1} parent=1 // pred_fallthru
      _
    // Predicated region
    $region34: #{tpu_custom_call.1} parent=1 // pred_check
      _
    $region35: #{tpu_custom_call.1} parent=1 // pred_check_branch
      %400 = sbr.rel (0) target = $region37
    $region36: #{tpu_custom_call.1} parent=1 // pred_region
      %401 = dma.done [#allocation5], 384
    $region37: #{tpu_custom_call.1} parent=1 // pred_fallthru
      _
    %402 = vsyncpa [#allocation4], 1
    %403 = vsyncpa [#allocation5], 1

</llo_original>
